<compile_context>
chip_gen: v6e
topology: v6e:2x2x1
jax: 0.10.0
libtpu: 0.0.40
codegen_flags: <defaults>
</compile_context>

<pallas_src>
import jax
import jax.numpy as jnp
import numpy as np
from jax.experimental import pallas as pl
from jax.experimental.pallas import tpu as pltpu


# ------------------------------ helpers ------------------------------------ #
def _round_up(x, m):
    return ((x + m - 1) // m) * m


def _fold_cheb_weights(weight):
    """Fold the K+1 per-hop Chebyshev weights into two (Cin, Cout) matrices.

    Each Tx_k in the reference forward is a_k * x + b_k * (L @ x) with a fixed
    L @ x (the PyTorch code applies spmm to `x` every hop), so

        out = x @ (sum_k a_k W_k) + (L @ x) @ (sum_k b_k W_k) + bias.
    """
    K = weight.shape[0]
    tx0 = (1.0, 0.0)                      # Tx_0 = x
    coeffs = [tx0]
    if K > 1:
        tx1 = (0.0, 1.0)                  # Tx_1 = Lx
        coeffs.append(tx1)
        for _ in range(2, K):             # Tx_2 = 2*Lx - Tx_0   (fixed Lx!)
            tx2 = (-tx0[0], 2.0 - tx0[1])
            coeffs.append(tx2)
            tx0, tx1 = tx1, tx2
    a = jnp.asarray([c[0] for c in coeffs], dtype=weight.dtype)
    b = jnp.asarray([c[1] for c in coeffs], dtype=weight.dtype)
    w_x = jnp.einsum("k,kio->io", a, weight)
    w_l = jnp.einsum("k,kio->io", b, weight)
    return w_x, w_l


def _auto_node_tile(n, *, sub, l_itemsize, x_itemsize, bcin, bcout,
                    vmem_limit_bytes, l_buffers):
    """Pick the node-row tile from the VMEM budget (resident slabs + streamed rows)."""
    lane = 128
    n_aligned = _round_up(n, sub)
    # Resident operands: feature slab (counted double-buffered & lane-padded),
    # folded weights (f32) and bias row (f32).
    resident = (2 * n_aligned * _round_up(bcin, lane) * x_itemsize
                + _round_up(2 * bcin, 8) * bcout * 4
                + 8 * bcout * 4)
    # Streamed bytes per output row: L row buffers + double-buffered f32 output rows.
    per_row = l_buffers * n_aligned * l_itemsize + 2 * bcout * 4
    avail = int(0.7 * vmem_limit_bytes) - resident
    max_rows = avail // per_row
    align = lane if n_aligned >= 2 * lane else sub
    tile = min(int(max_rows), 1024, n_aligned)     # 512-1024 rows ~ HBM roofline sweet spot
    if n_aligned >= 2 * align:
        # At least two row tiles so the 'parallel' axis can span both v7x
        # TensorCores (and amortize per-step overhead everywhere else).
        tile = min(tile, max(align, ((n_aligned // 2) // align) * align))
    tile = max(align, (tile // align) * align)
    return int(tile)


# ----------------------------- Pallas kernel ------------------------------- #
def _cheb_kernel(l_ref, x_ref, w_ref, b_ref, out_ref):
    """One node-row tile per grid step; batch is folded onto the lane axis.

    l_ref  : (tile_n, N_pad)        streamed row tile of the dense scaled Laplacian
    x_ref  : (N_pad, B*Cin)         resident node features (contraction operand)
    w_ref  : (2*B*Cin, bcout)       resident folded weights [W_x ; W_L], f32
    b_ref  : (1, bcout)             resident bias row, f32
    out_ref: (tile_n, bcout)        lane-dense f32 output slab (bcout % 128 == 0)
    """
    tile_n = l_ref.shape[0]

    # This tile's own feature rows, sliced from the resident slab (no extra DMA).
    row0 = pl.multiple_of(pl.program_id(0) * tile_n, tile_n)
    x_tile = x_ref[pl.ds(row0, tile_n), :]

    # One MXU pass computes L @ x for every batch element at once (f32 accumulate).
    lx = jnp.dot(l_ref[...], x_ref[...], preferred_element_type=jnp.float32)

    # Fused weight matmul: single dot of [x | Lx] against the folded weights.
    # Kept in f32 (weights tiny & resident) -> only one rounding step on the bf16 path.
    cat = jnp.concatenate([x_tile.astype(jnp.float32), lx], axis=-1)
    out = jnp.dot(cat, w_ref[...], preferred_element_type=jnp.float32)

    out_ref[...] = (out + b_ref[...]).astype(out_ref.dtype)


def cheb_conv_pallas(x, L, weight, bias, *, node_tile=None,
                     mxu_dtype=jnp.bfloat16, vmem_limit_bytes=48 * 2 ** 20,
                     l_buffer_count=2):
    """x: (B, N, Cin), L: (N, N), weight: (K+1, Cin, Cout), bias: (Cout,).

    mxu_dtype=bfloat16 by default (kernel is HBM-bound on streaming L; accumulation
    and the weight matmul stay f32).  node_tile, if given, is rounded to the dtype's
    sublane packing (16 for bf16, 8 for f32); otherwise it is auto-sized against
    vmem_limit_bytes.  Set l_buffer_count=3 to deepen the L pipeline on deep grids.
    """
    B, N, Cin = x.shape
    Cout = weight.shape[-1]
    bcin = B * Cin
    bcout = _round_up(B * Cout, 128)          # ONE lane-dense pad for the whole batch slab

    mxu_dtype = jnp.dtype(mxu_dtype)
    itemsize = mxu_dtype.itemsize
    sub = 16 if itemsize < 4 else 8           # bf16 sublane packing is (16, 128)

    # ---- node-row tile / padding ------------------------------------------ #
    if node_tile is None:
        tile_n = _auto_node_tile(N, sub=sub, l_itemsize=itemsize, x_itemsize=itemsize,
                                 bcin=bcin, bcout=bcout,
                                 vmem_limit_bytes=vmem_limit_bytes,
                                 l_buffers=max(2, l_buffer_count))
    else:
        tile_n = _round_up(min(node_tile, N), sub)
    n_pad = _round_up(N, tile_n)              # zero-pad so no block reads out of bounds
    grid = (n_pad // tile_n,)

    # ---- wrapper-side algebra / layout plumbing (hoisted out of the kernel) ---- #
    w_x, w_l = _fold_cheb_weights(weight)

    # Shared folded weights, per-batch blocks at stride Cout inside one padded slab.
    w_big = jnp.zeros((2 * bcin, bcout), jnp.float32)
    bias_row = jnp.zeros((1, bcout), jnp.float32)
    for b in range(B):                        # B is small & static
        r, c = b * Cin, b * Cout
        w_big = w_big.at[r:r + Cin, c:c + Cout].set(w_x.astype(jnp.float32))
        w_big = w_big.at[bcin + r:bcin + r + Cin, c:c + Cout].set(w_l.astype(jnp.float32))
        bias_row = bias_row.at[0, c:c + Cout].set(bias.astype(jnp.float32))

    # Fold batch onto the lane axis: (B, N, Cin) -> (N, B*Cin); pad node rows/cols.
    x_t = jnp.transpose(x, (1, 0, 2)).reshape(N, bcin)
    x_m = jnp.pad(x_t, ((0, n_pad - N), (0, 0))).astype(mxu_dtype)
    l_m = jnp.pad(L, ((0, n_pad - N), (0, n_pad - N))).astype(mxu_dtype)

    cost = pl.CostEstimate(
        flops=2 * n_pad * n_pad * bcin + 2 * n_pad * (2 * bcin) * bcout,
        transcendentals=0,
        bytes_accessed=(l_m.size + x_m.size) * itemsize
        + (w_big.size + bias_row.size + n_pad * bcout) * 4,
    )

    l_spec_kwargs = {}
    if l_buffer_count > 2:                    # deepen only the streamed L operand
        l_spec_kwargs["pipeline_mode"] = pl.Buffered(l_buffer_count)

    out_t = pl.pallas_call(
        _cheb_kernel,
        out_shape=jax.ShapeDtypeStruct((n_pad, bcout), jnp.float32),
        grid=grid,
        in_specs=[
            pl.BlockSpec((tile_n, n_pad), lambda i: (i, 0), **l_spec_kwargs),  # streamed L
            pl.BlockSpec((n_pad, bcin), lambda i: (0, 0)),       # resident features
            pl.BlockSpec((2 * bcin, bcout), lambda i: (0, 0)),   # resident folded weights
            pl.BlockSpec((1, bcout), lambda i: (0, 0)),          # resident bias row
        ],
        out_specs=pl.BlockSpec((tile_n, bcout), lambda i: (i, 0)),
        compiler_params=pltpu.CompilerParams(
            dimension_semantics=("parallel",),
            vmem_limit_bytes=vmem_limit_bytes,
        ),
        cost_estimate=cost,
    )(l_m, x_m, w_big, bias_row)

    # Unpack lanes: (n_pad, bcout) -> (B, N, Cout).
    out = out_t[:N, :B * Cout].reshape(N, B, Cout)
    return jnp.transpose(out, (1, 0, 2))
    # TODO(synk): for very large N, tile L's contraction (column) dim with a second
    # 'arbitrary' grid axis + f32 accumulator, and use block-CSR via
    # PrefetchScalarGridSpec so only nonzero L blocks are streamed.


# ------------------------------ JAX glue ----------------------------------- #
# TODO(synk): the sparse scatter_add / add_self_loops / spmm preprocessing has no
# clean Pallas equivalent at these sizes; it is done as dense JAX glue outside the
# kernel (the kernel consumes the densified scaled Laplacian).
def build_scaled_laplacian(edge_index, edge_weight, num_nodes, fill_value=-0.05):
    """Replicates the normalization + self-loop logic of the PyTorch forward,
    returning a dense (N, N) matrix whose entries equal the (already *2) `lap`
    values used by spmm."""
    row, col = edge_index[0], edge_index[1]
    edge_weight = edge_weight.reshape(-1)

    deg = jnp.zeros((num_nodes,), jnp.float32).at[row].add(edge_weight)
    deg_inv_sqrt = deg ** -0.5
    deg_inv_sqrt = jnp.where(jnp.isinf(deg_inv_sqrt), 0.0, deg_inv_sqrt)

    lap = -deg_inv_sqrt[row] * edge_weight * deg_inv_sqrt[col]

    # add_self_loops(edge_index, lap, fill_value, num_nodes)
    loop_idx = jnp.arange(num_nodes, dtype=row.dtype)
    row_full = jnp.concatenate([row, loop_idx])
    col_full = jnp.concatenate([col, loop_idx])
    lap_full = jnp.concatenate(
        [lap, jnp.full((num_nodes,), fill_value, jnp.float32)]
    )
    lap_full = lap_full * 2.0  # lap *= 2

    L = jnp.zeros((num_nodes, num_nodes), jnp.float32).at[row_full, col_full].add(lap_full)
    return L


def cheb_conv_reference(x, L, weight, bias):
    """Pure-JAX reference mirroring the PyTorch forward (per-hop, unfolded)."""
    K = weight.shape[0]
    hp = jax.lax.Precision.HIGHEST
    Lx = jnp.einsum("nm,bmc->bnc", L, x, precision=hp)
    Tx_0 = x
    out = jnp.einsum("bnc,co->bno", Tx_0, weight[0], precision=hp)
    if K > 1:
        Tx_1 = Lx
        out = out + jnp.einsum("bnc,co->bno", Tx_1, weight[1], precision=hp)
    for k in range(2, K):
        Tx_2 = 2.0 * Lx - Tx_0
        out = out + jnp.einsum("bnc,co->bno", Tx_2, weight[k], precision=hp)
        Tx_0, Tx_1 = Tx_1, Tx_2
    return out + bias


# --------------------------------- main ------------------------------------ #
if __name__ == "__main__":
    key = jax.random.PRNGKey(0)
    k_x, k_e, k_w, k_wt = jax.random.split(key, 4)

    # Small problem: batch=2, 16 nodes, 8 -> 8 channels, K (hops) = 3.
    B, N, Cin, Cout, K_hops = 2, 16, 8, 8, 3
    K_total = K_hops + 1                      # weight has shape (K+1, Cin, Cout)
    num_edges = 40

    x = jax.random.normal(k_x, (B, N, Cin), dtype=jnp.float32)

    # Random directed edges with positive weights (deterministic).
    edge_index = jax.random.randint(k_e, (2, num_edges), 0, N, dtype=jnp.int32)
    edge_weight = jax.random.uniform(
        k_wt, (num_edges,), minval=0.5, maxval=1.5, dtype=jnp.float32
    )

    # Parameters: kaiming_normal_(a=0, mode='fan_in') on (K+1, Cin, Cout)
    # => fan_in = Cin * Cout, gain = sqrt(2). Bias initialized to 0.
    fan_in = Cin * Cout
    std = float(np.sqrt(2.0 / fan_in))
    weight = std * jax.random.normal(k_w, (K_total, Cin, Cout), dtype=jnp.float32)
    bias = jnp.zeros((Cout,), dtype=jnp.float32)

    # Graph preprocessing (glue) -> dense scaled Laplacian.
    L = build_scaled_laplacian(edge_index, edge_weight, N, fill_value=-0.05)

    # Pure-JAX reference mirroring the PyTorch forward.
    ref = jax.block_until_ready(cheb_conv_reference(x, L, weight, bias))

    # f32 MXU inputs (tight check).
    out_f32 = jax.block_until_ready(
        cheb_conv_pallas(x, L, weight, bias, mxu_dtype=jnp.float32)
    )
    np.testing.assert_allclose(np.asarray(out_f32), np.asarray(ref),
                               rtol=1e-4, atol=1e-4)

    # Default path: bf16 L/x on the MXU (HBM-bound lever), f32 accumulation + f32
    # weight matmul (loose check — only L/x are rounded to bf16).
    out_bf16 = jax.block_until_ready(cheb_conv_pallas(x, L, weight, bias))
    np.testing.assert_allclose(np.asarray(out_bf16), np.asarray(ref),
                               rtol=5e-2, atol=1e-1)

    print("KERNEL_OK")
</pallas_src>

<mosaic_0001>
module attributes {stable_mosaic.version = 11 : i64} {
  func.func @_cheb_kernel(%arg0: i32, %arg1: memref<8x16xf32, #tpu.memory_space<vmem>>, %arg2: memref<16x16xf32, #tpu.memory_space<vmem>>, %arg3: memref<32x128xf32, #tpu.memory_space<vmem>>, %arg4: memref<1x128xf32, #tpu.memory_space<vmem>>, %arg5: memref<8x128xf32, #tpu.memory_space<vmem>>) attributes {dimension_semantics = [#tpu.dimension_semantics<parallel>], iteration_bounds = array<i64: 2>, scalar_prefetch = 0 : i64, scratch_operands = 0 : i64, tpu.core_type = #tpu.core_type<tc>, window_params = [{transform_indices = @transform_0, window_bounds = array<i64: 8, 16>}, {pipeline_mode = #tpu.pipeline_mode<synchronous>, transform_indices = @transform_1, window_bounds = array<i64: 16, 16>}, {pipeline_mode = #tpu.pipeline_mode<synchronous>, transform_indices = @transform_2, window_bounds = array<i64: 32, 128>}, {pipeline_mode = #tpu.pipeline_mode<synchronous>, transform_indices = @transform_3, window_bounds = array<i64: 1, 128>}, {transform_indices = @transform_4, window_bounds = array<i64: 8, 128>}]} {
    %c8_i32 = arith.constant 8 : i32
    %0 = arith.muli %arg0, %c8_i32 : i32
    %1 = tpu.assume_multiple %0, 8 : i32
    %2 = arith.index_cast %1 : i32 to index
    %c0 = arith.constant 0 : index
    %3 = vector.load %arg2[%2, %c0] : memref<16x16xf32, #tpu.memory_space<vmem>>, vector<8x16xf32>
    %c0_0 = arith.constant 0 : index
    %c0_1 = arith.constant 0 : index
    %4 = vector.load %arg1[%c0_0, %c0_1] : memref<8x16xf32, #tpu.memory_space<vmem>>, vector<8x16xf32>
    %c0_2 = arith.constant 0 : index
    %c0_3 = arith.constant 0 : index
    %5 = vector.load %arg2[%c0_2, %c0_3] : memref<16x16xf32, #tpu.memory_space<vmem>>, vector<16x16xf32>
    %cst = arith.constant dense<0.000000e+00> : vector<8x16xf32>
    %6 = tpu.matmul %4, %5, %cst {dimension_numbers = #tpu.dot_dimension_numbers<[1], [0], [0], [1], [0, 0, 1, 1], [], []>} : vector<8x16xf32>, vector<16x16xf32>, vector<8x16xf32> -> vector<8x16xf32>
    %7 = tpu.concatenate %3, %6 in 1 : vector<8x16xf32>, vector<8x16xf32> -> vector<8x32xf32>
    %c0_4 = arith.constant 0 : index
    %c0_5 = arith.constant 0 : index
    %8 = vector.load %arg3[%c0_4, %c0_5] : memref<32x128xf32, #tpu.memory_space<vmem>>, vector<32x128xf32>
    %cst_6 = arith.constant dense<0.000000e+00> : vector<8x128xf32>
    %9 = tpu.matmul %7, %8, %cst_6 {dimension_numbers = #tpu.dot_dimension_numbers<[1], [0], [0], [1], [0, 0, 1, 1], [], []>} : vector<8x32xf32>, vector<32x128xf32>, vector<8x128xf32> -> vector<8x128xf32>
    %c0_7 = arith.constant 0 : index
    %c0_8 = arith.constant 0 : index
    %10 = vector.load %arg4[%c0_7, %c0_8] : memref<1x128xf32, #tpu.memory_space<vmem>>, vector<1x128xf32>
    %11 = vector.broadcast %10 : vector<1x128xf32> to vector<8x128xf32>
    %12 = arith.addf %9, %11 : vector<8x128xf32>
    %c0_9 = arith.constant 0 : index
    %c0_10 = arith.constant 0 : index
    %13 = vector.load %arg5[%c0_9, %c0_10] : memref<8x128xf32, #tpu.memory_space<vmem>>, vector<8x128xf32>
    tpu.vector_store %arg5[%c0_9, %c0_10], %12 {strides = array<i32>} : memref<8x128xf32, #tpu.memory_space<vmem>>, vector<8x128xf32>,
    return
  }
  func.func @transform_0(%arg0: i32) -> (i32, i32) {
    %c0_i32 = arith.constant 0 : i32
    %c0_i32_0 = arith.constant 0 : i32
    return %arg0, %c0_i32 : i32, i32
  }
  func.func @transform_1(%arg0: i32) -> (i32, i32) {
    %c0_i32 = arith.constant 0 : i32
    %c0_i32_0 = arith.constant 0 : i32
    %c0_i32_1 = arith.constant 0 : i32
    return %c0_i32, %c0_i32_0 : i32, i32
  }
  func.func @transform_2(%arg0: i32) -> (i32, i32) {
    %c0_i32 = arith.constant 0 : i32
    %c0_i32_0 = arith.constant 0 : i32
    %c0_i32_1 = arith.constant 0 : i32
    return %c0_i32, %c0_i32_0 : i32, i32
  }
  func.func @transform_3(%arg0: i32) -> (i32, i32) {
    %c0_i32 = arith.constant 0 : i32
    %c0_i32_0 = arith.constant 0 : i32
    %c0_i32_1 = arith.constant 0 : i32
    return %c0_i32, %c0_i32_0 : i32, i32
  }
  func.func @transform_4(%arg0: i32) -> (i32, i32) {
    %c0_i32 = arith.constant 0 : i32
    %c0_i32_0 = arith.constant 0 : i32
    return %arg0, %c0_i32 : i32, i32
  }
}

</mosaic_0001>

<llo_original>
// kernel: tpu_custom_call.1
$region0: #{tpu_custom_call.1}
  #allocation0 [shape = 'u32[]', space=smem, size = 0x4, offset = 0x4, fixed_abs, tag = 'smem constant byte address 0x4 - core index']
  #allocation1 [shape = 'u32[144,128]{1,0:T(1,128)}', space=vmem, size = 0x12000, scoped, tag = 'internal scratch']
  %s0 = inlined_call_operand.hbm [shape: f32[16,16], index: 0, kind: input, shape index: {}]
  %s1 = inlined_call_operand.hbm [shape: f32[16,16], index: 1, kind: input, shape index: {}]
  %s2 = inlined_call_operand.hbm [shape: f32[32,128], index: 2, kind: input, shape index: {}]
  %s3 = inlined_call_operand.vmem [shape: f32[1,128], index: 3, kind: input, shape index: {}]
  %s4 = inlined_call_operand.hbm [shape: f32[16,128], index: 4, kind: output, shape index: {}]
  %s5 = sld [smem:[#allocation0]]
  $region61: #{tpu_custom_call.1} parent=0
    _
  %s7 = ssub.s32 1, %s5
  %s8 = scalar_select 0, %s7, %s5
  $region1: #{tpu_custom_call.1} parent=0
    #allocation2 [shape = 'u8[8192]{0}', space=vmem, size = 0x2000, scoped, tag = 'input window, operand 0']
    #allocation3 [shape = 's32[2]{0}', space=sflag, size = 0x8, scoped, tag = 'scoped memory for tpu_custom_call.1']
    #allocation4 [shape = 's32[2]{0}', space=sflag, size = 0x8, scoped, tag = 'scoped memory for tpu_custom_call.1']
    #allocation5 [shape = 'u8[8192]{0}', space=vmem, size = 0x2000, scoped, tag = 'input window, operand 1, single buffered']
    #allocation6 [shape = 's32[1]{0}', space=sflag, size = 0x4, scoped, tag = 'scoped memory for tpu_custom_call.1']
    #allocation7 [shape = 'u8[16384]{0}', space=vmem, size = 0x4000, scoped, tag = 'input window, operand 2, single buffered']
    #allocation8 [shape = 'u8[8192]{0}', space=vmem, size = 0x2000, scoped, tag = 'output window, operand 0']
    %9 = vsyncpa [#allocation3], 0
    %s10 = scalar_lea.sflag [#allocation3], 1
    %11 = vsyncpa %s10, 0
    %12 = vsyncpa [#allocation6], 0
    %13 = vsyncpa [#allocation4], 0
    %s14 = scalar_lea.sflag [#allocation4], 1
    %15 = vsyncpa %s14, 0
    loop: start=0, step=1, limit=4
    $region2: #{tpu_custom_call.1} parent=1 // loop_pre_header
      _
    $region3: #{tpu_custom_call.1} parent=1 // loop_header
      %s17 = sphi 0, %s21
      %p18 = scmp.ge.s32.totalorder %s17, 4
      %s27 = sphi 0, %s29
      %s30 = sphi 0, %s27
      %s31 = sphi 0, %s30
      %s47 = sphi 0, %s31
      %s51 = sphi 0, %s51
      %s53 = sphi 0, %s51
      %s54 = sphi 0, %s53
      %s68 = sphi 0, %s54
      %s72 = sphi 0, %s72
      %s74 = sphi 0, %s72
      %s75 = sphi 0, %s74
      %s89 = sphi 0, %s75
      %s93 = sphi 0, %s93
      %s95 = sphi 0, %s93
      %s96 = sphi 0, %s95
      %s110 = sphi 0, %s96
      %s116 = sphi 0, %s118
      %s119 = sphi 0, %s116
      %s120 = sphi 0, %s119
      %s136 = sphi 0, %s120
    $region4: #{tpu_custom_call.1} parent=1 // loop_header_branch
      %20 = sbr.rel (%p18) target = $region8
    $region5: #{tpu_custom_call.1} parent=1 // loop_body
      %s22 = ssub.s32 %s17, 1
      %s23 = ssub.s32 %s17, 2
      %s24 = sadd.s32 %s17, 1
      %s25 = ssub.s32 %s17, %s24
      %p26 = scmp.eq.s32.totalorder %s25, 0
      %s28 = sadd.s32 %s27, 1
      %s29 = scalar_select %p26, %s27, %s28
      %p32 = pneg %p26
      %p33 = scmp.eq.s32.totalorder %s17, 1
      %p34 = por %p32, %p33
      %p35 = scmp.ne.s32.totalorder %s27, %s30
      %p36 = scmp.eq.s32.totalorder %s17, 0
      %p37 = por %p35, %p36
      %p38 = scmp.ne.s32.totalorder %s27, %s30
      %p39 = scmp.eq.s32.totalorder %s22, 1
      %p40 = por %p38, %p39
      %p41 = scmp.ne.s32.totalorder %s30, %s31
      %p42 = scmp.eq.s32.totalorder %s22, 0
      %p43 = por %p41, %p42
      %p44 = scmp.ne.s32.totalorder %s30, %s31
      %p45 = scmp.eq.s32.totalorder %s23, 1
      %p46 = por %p44, %p45
      %p48 = scmp.ne.s32.totalorder %s31, %s47
      %p49 = scmp.eq.s32.totalorder %s23, 0
      %p50 = por %p48, %p49
      %s52 = sadd.s32 %s51, 1
      %p55 = scmp.eq.s32.totalorder %s17, 1
      %p56 = scmp.ne.s32.totalorder %s51, %s53
      %p57 = scmp.eq.s32.totalorder %s17, 0
      %p58 = por %p56, %p57
      %p59 = scmp.ne.s32.totalorder %s51, %s53
      %p60 = scmp.eq.s32.totalorder %s22, 1
      %p61 = por %p59, %p60
      %p62 = scmp.ne.s32.totalorder %s53, %s54
      %p63 = scmp.eq.s32.totalorder %s22, 0
      %p64 = por %p62, %p63
      %p65 = scmp.ne.s32.totalorder %s53, %s54
      %p66 = scmp.eq.s32.totalorder %s23, 1
      %p67 = por %p65, %p66
      %p69 = scmp.ne.s32.totalorder %s54, %s68
      %p70 = scmp.eq.s32.totalorder %s23, 0
      %p71 = por %p69, %p70
      %s73 = sadd.s32 %s72, 1
      %p76 = scmp.eq.s32.totalorder %s17, 1
      %p77 = scmp.ne.s32.totalorder %s72, %s74
      %p78 = scmp.eq.s32.totalorder %s17, 0
      %p79 = por %p77, %p78
      %p80 = scmp.ne.s32.totalorder %s72, %s74
      %p81 = scmp.eq.s32.totalorder %s22, 1
      %p82 = por %p80, %p81
      %p83 = scmp.ne.s32.totalorder %s74, %s75
      %p84 = scmp.eq.s32.totalorder %s22, 0
      %p85 = por %p83, %p84
      %p86 = scmp.ne.s32.totalorder %s74, %s75
      %p87 = scmp.eq.s32.totalorder %s23, 1
      %p88 = por %p86, %p87
      %p90 = scmp.ne.s32.totalorder %s75, %s89
      %p91 = scmp.eq.s32.totalorder %s23, 0
      %p92 = por %p90, %p91
      %s94 = sadd.s32 %s93, 1
      %p97 = scmp.eq.s32.totalorder %s17, 1
      %p98 = scmp.ne.s32.totalorder %s93, %s95
      %p99 = scmp.eq.s32.totalorder %s17, 0
      %p100 = por %p98, %p99
      %p101 = scmp.ne.s32.totalorder %s93, %s95
      %p102 = scmp.eq.s32.totalorder %s22, 1
      %p103 = por %p101, %p102
      %p104 = scmp.ne.s32.totalorder %s95, %s96
      %p105 = scmp.eq.s32.totalorder %s22, 0
      %p106 = por %p104, %p105
      %p107 = scmp.ne.s32.totalorder %s95, %s96
      %p108 = scmp.eq.s32.totalorder %s23, 1
      %p109 = por %p107, %p108
      %p111 = scmp.ne.s32.totalorder %s96, %s110
      %p112 = scmp.eq.s32.totalorder %s23, 0
      %p113 = por %p111, %p112
      %s114 = ssub.s32 %s17, %s24
      %p115 = scmp.eq.s32.totalorder %s114, 0
      %s117 = sadd.s32 %s116, 1
      %s118 = scalar_select %p115, %s116, %s117
      %p121 = pneg %p115
      %p122 = scmp.eq.s32.totalorder %s17, 1
      %p123 = por %p121, %p122
      %p124 = scmp.ne.s32.totalorder %s116, %s119
      %p125 = scmp.eq.s32.totalorder %s17, 0
      %p126 = por %p124, %p125
      %p127 = scmp.ne.s32.totalorder %s116, %s119
      %p128 = scmp.eq.s32.totalorder %s22, 1
      %p129 = por %p127, %p128
      %p130 = scmp.ne.s32.totalorder %s119, %s120
      %p131 = scmp.eq.s32.totalorder %s22, 0
      %p132 = por %p130, %p131
      %p133 = scmp.ne.s32.totalorder %s119, %s120
      %p134 = scmp.eq.s32.totalorder %s23, 1
      %p135 = por %p133, %p134
      %p137 = scmp.ne.s32.totalorder %s120, %s136
      %p138 = scmp.eq.s32.totalorder %s23, 0
      %p139 = por %p137, %p138
      %p140 = scmp.le.s32.totalorder 1, %s17
      %p141 = scmp.lt.s32.totalorder %s17, 3
      %p142 = pnand %p140, %p141
      %p143 = pneg %p142
      // Predicated region
      $region9: #{tpu_custom_call.1} parent=5 // pred_check
        _
      $region10: #{tpu_custom_call.1} parent=5 // pred_check_branch
        %145 = sbr.rel (%p142) target = $region12
      $region11: #{tpu_custom_call.1} parent=5 // pred_region
        %s146 = ssub.s32 %s17, 1
        // Predicated region
        $region13: #{tpu_custom_call.1} parent=11 // pred_check
          %p147 = pneg %p64
        $region14: #{tpu_custom_call.1} parent=11 // pred_check_branch
          %149 = sbr.rel (%p147) target = $region16
        $region15: #{tpu_custom_call.1} parent=11 // pred_region
          %s151 = ssub.s32 256, 256
          %152 = vsyncadd [#allocation6], %s151
          %s153 = sshll.u32 [#allocation5], 4
          %s154 = int_to_ptr.vmem [resolvable:$true] %s153
          %159 = dma.hbm_to_vmem [thread:$0]  %s1, 256, %s154, [#allocation6], 128, 128, 8
        $region16: #{tpu_custom_call.1} parent=11 // pred_fallthru
          _
        // Predicated region
        $region17: #{tpu_custom_call.1} parent=11 // pred_check
          %p160 = pneg %p85
        $region18: #{tpu_custom_call.1} parent=11 // pred_check_branch
          %162 = sbr.rel (%p160) target = $region20
        $region19: #{tpu_custom_call.1} parent=11 // pred_region
          %s164 = ssub.s32 512, 512
          %165 = vsyncadd [#allocation6], %s164
          %s166 = sshll.u32 [#allocation7], 4
          %s167 = int_to_ptr.vmem [resolvable:$true] %s166
          %172 = dma.hbm_to_vmem [thread:$0]  %s2, 512, %s167, [#allocation6], 128, 128, 8
        $region20: #{tpu_custom_call.1} parent=11 // pred_fallthru
          _
        // Predicated region
        $region21: #{tpu_custom_call.1} parent=11 // pred_check
          %p173 = pneg %p106
        $region22: #{tpu_custom_call.1} parent=11 // pred_check_branch
          %175 = sbr.rel (%p173) target = $region24
        $region23: #{tpu_custom_call.1} parent=11 // pred_region
          _
        $region24: #{tpu_custom_call.1} parent=11 // pred_fallthru
          _
      $region12: #{tpu_custom_call.1} parent=5 // pred_fallthru
        _
      %p176 = scmp.lt.s32.totalorder %s17, 2
      // Predicated region
      $region25: #{tpu_custom_call.1} parent=5 // pred_check
        %p177 = pneg %p176
      $region26: #{tpu_custom_call.1} parent=5 // pred_check_branch
        %179 = sbr.rel (%p177) target = $region28
      $region27: #{tpu_custom_call.1} parent=5 // pred_region
        // Predicated region
        $region29: #{tpu_custom_call.1} parent=27 // pred_check
          %p180 = pneg %p37
        $region30: #{tpu_custom_call.1} parent=27 // pred_check_branch
          %182 = sbr.rel (%p180) target = $region32
        $region31: #{tpu_custom_call.1} parent=27 // pred_region
          %s183 = sand.u32 %s27, 1
          %s184 = scalar_lea.sflag [#allocation3], %s183
          %s185 = sand.u32 %s27, 1
          %s186 = smul.addr %s185, 8
          %s187 = scalar_lea.vmem [#allocation2], %s186
          %s189 = ssub.s32 128, 128
          %190 = vsyncadd %s184, %s189
          %s191 = smul.addr %s17, 128
          %s192 = scalar_lea.hbm %s0, %s191
          %s194 = sshll.u32 %s187, 4
          %s195 = int_to_ptr.vmem [resolvable:$true] %s194
          %197 = dma.hbm_to_vmem [thread:$0]  %s192, 128, %s195, %s184
        $region32: #{tpu_custom_call.1} parent=27 // pred_fallthru
          _
      $region28: #{tpu_custom_call.1} parent=5 // pred_fallthru
        _
      %p198 = scmp.le.s32.totalorder 1, %s17
      %p199 = scmp.lt.s32.totalorder %s17, 3
      %p200 = pnand %p198, %p199
      %p201 = pneg %p200
      // Predicated region
      $region33: #{tpu_custom_call.1} parent=5 // pred_check
        _
      $region34: #{tpu_custom_call.1} parent=5 // pred_check_branch
        %203 = sbr.rel (%p200) target = $region36
      $region35: #{tpu_custom_call.1} parent=5 // pred_region
        %s204 = ssub.s32 %s17, 1
        %s205 = sand.u32 %s30, 1
        %s206 = scalar_lea.sflag [#allocation3], %s205
        %s207 = sand.u32 %s30, 1
        %s208 = smul.addr %s207, 8
        %s209 = scalar_lea.vmem [#allocation2], %s208
        // Predicated region
        $region37: #{tpu_custom_call.1} parent=35 // pred_check
          %p210 = pneg %p43
        $region38: #{tpu_custom_call.1} parent=35 // pred_check_branch
          %212 = sbr.rel (%p210) target = $region40
        $region39: #{tpu_custom_call.1} parent=35 // pred_region
          %213 = dma.done %s206, 128
        $region40: #{tpu_custom_call.1} parent=35 // pred_fallthru
          _
        // Predicated region
        $region41: #{tpu_custom_call.1} parent=35 // pred_check
          %p214 = pneg %p64
        $region42: #{tpu_custom_call.1} parent=35 // pred_check_branch
          %216 = sbr.rel (%p214) target = $region44
        $region43: #{tpu_custom_call.1} parent=35 // pred_region
          %217 = dma.done [#allocation6], 256
        $region44: #{tpu_custom_call.1} parent=35 // pred_fallthru
          _
        // Predicated region
        $region45: #{tpu_custom_call.1} parent=35 // pred_check
          %p218 = pneg %p85
        $region46: #{tpu_custom_call.1} parent=35 // pred_check_branch
          %220 = sbr.rel (%p218) target = $region48
        $region47: #{tpu_custom_call.1} parent=35 // pred_region
          %221 = dma.done [#allocation6], 512
        $region48: #{tpu_custom_call.1} parent=35 // pred_fallthru
          _
        %s222 = sand.u32 %s30, 1
        %s223 = scalar_lea.sflag [#allocation3], %s222
        %s224 = sand.u32 %s30, 1
        %s225 = smul.addr %s224, 8
        %s226 = scalar_lea.vmem [#allocation2], %s225
        %p227 = pneg %p43
        %p228 = pneg %p40
        %p229 = pneg %p64
        %p230 = pneg %p61
        %p231 = pneg %p85
        %p232 = pneg %p82
        %p233 = pneg %p106
        %p234 = pneg %p103
        %p235 = pneg %p132
        %p236 = pneg %p129
        %s237 = sand.u32 %s119, 1
        %s238 = scalar_lea.sflag [#allocation4], %s237
        %s239 = sand.u32 %s119, 1
        %s240 = smul.addr %s239, 8
        %s241 = scalar_lea.vmem [#allocation8], %s240
        %s242 = smul.u32 %s22, 8
        %s243 = scalar_lea.vmem [#allocation5], %s242
        %v244 = vld [vmem:[%s243] sm:$0xff]
        %v245 = vld [vmem:[%s209] sm:$0xff]
        %v246 = vld [vmem:[#allocation5] sm:$0xff]
        %v247 = vld [vmem:[#allocation5 + $0x8] sm:$0xff]
        %vm248 = vcmask 130048
        %v250 = vsel %vm248, %v245, 0
        %252 = vmatprep.subr.mxu0 0.0
        %253 = vmatpush1.msra.mxu0 0.0
        %254 = vmatprep.subr.mxu0 0.0
        %255 = vmatpush1.msra.mxu0 0.0
        %256 = vmatprep.subr.mxu0 0.0
        %257 = vmatpush1.msra.mxu0 0.0
        %258 = vmatprep.subr.mxu0 0.0
        %259 = vmatpush1.msra.mxu0 0.0
        %260 = vmatprep.subr.mxu0 0.0
        %261 = vmatpush1.msra.mxu0 0.0
        %262 = vmatprep.subr.mxu0 0.0
        %263 = vmatpush1.msra.mxu0 0.0
        %264 = vmatprep.subr.mxu0 0.0
        %265 = vmatpush1.msra.mxu0 0.0
        %266 = vmatprep.subr.mxu0 0.0
        %267 = vmatpush1.msra.mxu0 0.0
        %268 = vmatprep.subr.mxu0 0.0
        %269 = vmatpush1.msra.mxu0 0.0
        %270 = vmatprep.subr.mxu0 0.0
        %271 = vmatpush1.msra.mxu0 0.0
        %272 = vmatprep.subr.mxu0 0.0
        %273 = vmatpush1.msra.mxu0 0.0
        %274 = vmatprep.subr.mxu0 0.0
        %275 = vmatpush1.msra.mxu0 0.0
        %276 = vmatprep.subr.mxu0 0.0
        %277 = vmatpush1.msra.mxu0 0.0
        %278 = vmatprep.subr.mxu0 0.0
        %279 = vmatpush1.msra.mxu0 0.0
        %280 = vmatprep.subr.mxu0 0.0
        %281 = vmatpush1.msra.mxu0 %v247
        %282 = vmatprep.subr.mxu0 0.0
        %283 = vmatpush1.msra.mxu0 %v246
        %284 = vmatprep.subr.mxu0 0.0
        %285 = vmatpush2.msra.mxu0 0.0
        %286 = vmatprep.subr.mxu0 0.0
        %287 = vmatpush2.msra.mxu0 0.0
        %288 = vmatprep.subr.mxu0 0.0
        %289 = vmatpush2.msra.mxu0 0.0
        %290 = vmatprep.subr.mxu0 0.0
        %291 = vmatpush2.msra.mxu0 0.0
        %292 = vmatprep.subr.mxu0 0.0
        %293 = vmatpush2.msra.mxu0 0.0
        %294 = vmatprep.subr.mxu0 0.0
        %295 = vmatpush2.msra.mxu0 0.0
        %296 = vmatprep.subr.mxu0 0.0
        %297 = vmatpush2.msra.mxu0 0.0
        %298 = vmatprep.subr.mxu0 0.0
        %299 = vmatpush2.msra.mxu0 0.0
        %300 = vmatprep.subr.mxu0 0.0
        %301 = vmatpush2.msra.mxu0 0.0
        %302 = vmatprep.subr.mxu0 0.0
        %303 = vmatpush2.msra.mxu0 0.0
        %304 = vmatprep.subr.mxu0 0.0
        %305 = vmatpush2.msra.mxu0 0.0
        %306 = vmatprep.subr.mxu0 0.0
        %307 = vmatpush2.msra.mxu0 0.0
        %308 = vmatprep.subr.mxu0 0.0
        %309 = vmatpush2.msra.mxu0 0.0
        %310 = vmatprep.subr.mxu0 0.0
        %311 = vmatpush2.msra.mxu0 0.0
        %312 = vmatprep.subr.mxu0 0.0
        %313 = vmatpush2.msra.mxu0 0.0
        %314 = vmatprep.subr.mxu0 0.0
        %315 = vmatpush2.msra.mxu0 0.0
        %316 = vmatprep.mubr.f32.mxu0 0.0
        %317 = vmatmul.mubr.f32.gmra.mxu0 %v250
        %v318 = vpop.f32.mrf.mxu0
        %v319 = vadd.f32 0.0, %v318
        %v320 = vpop.f32.mrf.mxu0
        %321 = vdwg.mxu0
        %323 = vrot.lane.b32.xlu0 %v319, 16
        %v324 = vpop.permute.xlu0 %323
        %v326 = vsel %vm248, %v244, %v324
        %v327 = vld [vmem:[#allocation7] sm:$0xff]
        %v328 = vld [vmem:[#allocation7 + $0x8] sm:$0xff]
        %v329 = vld [vmem:[#allocation7 + $0x10] sm:$0xff]
        %v330 = vld [vmem:[#allocation7 + $0x18] sm:$0xff]
        %v331 = vld [vmem:[%s3] sm:$0x1]
        %v333 = vlaneseq
        %v334 = vshrl.u32 %v333, 7
        %v335 = vsub.s32 0, %v334
        %v336 = vrot.slane %v331, %v335
        %vm338 = vcmask 261120
        %v340 = vsel %vm338, %v326, 0
        %342 = vmatprep.subr.mxu0 0.0
        %343 = vmatpush1.msra.mxu0 0.0
        %344 = vmatprep.subr.mxu0 0.0
        %345 = vmatpush1.msra.mxu0 0.0
        %346 = vmatprep.subr.mxu0 0.0
        %347 = vmatpush1.msra.mxu0 0.0
        %348 = vmatprep.subr.mxu0 0.0
        %349 = vmatpush1.msra.mxu0 0.0
        %350 = vmatprep.subr.mxu0 0.0
        %351 = vmatpush1.msra.mxu0 0.0
        %352 = vmatprep.subr.mxu0 0.0
        %353 = vmatpush1.msra.mxu0 0.0
        %354 = vmatprep.subr.mxu0 0.0
        %355 = vmatpush1.msra.mxu0 0.0
        %356 = vmatprep.subr.mxu0 0.0
        %357 = vmatpush1.msra.mxu0 0.0
        %358 = vmatprep.subr.mxu0 0.0
        %359 = vmatpush1.msra.mxu0 0.0
        %360 = vmatprep.subr.mxu0 0.0
        %361 = vmatpush1.msra.mxu0 0.0
        %362 = vmatprep.subr.mxu0 0.0
        %363 = vmatpush1.msra.mxu0 0.0
        %364 = vmatprep.subr.mxu0 0.0
        %365 = vmatpush1.msra.mxu0 0.0
        %366 = vmatprep.subr.mxu0 0.0
        %367 = vmatpush1.msra.mxu0 %v330
        %368 = vmatprep.subr.mxu0 0.0
        %369 = vmatpush1.msra.mxu0 %v329
        %370 = vmatprep.subr.mxu0 0.0
        %371 = vmatpush1.msra.mxu0 %v328
        %372 = vmatprep.subr.mxu0 0.0
        %373 = vmatpush1.msra.mxu0 %v327
        %374 = vmatprep.subr.mxu0 0.0
        %375 = vmatpush2.msra.mxu0 0.0
        %376 = vmatprep.subr.mxu0 0.0
        %377 = vmatpush2.msra.mxu0 0.0
        %378 = vmatprep.subr.mxu0 0.0
        %379 = vmatpush2.msra.mxu0 0.0
        %380 = vmatprep.subr.mxu0 0.0
        %381 = vmatpush2.msra.mxu0 0.0
        %382 = vmatprep.subr.mxu0 0.0
        %383 = vmatpush2.msra.mxu0 0.0
        %384 = vmatprep.subr.mxu0 0.0
        %385 = vmatpush2.msra.mxu0 0.0
        %386 = vmatprep.subr.mxu0 0.0
        %387 = vmatpush2.msra.mxu0 0.0
        %388 = vmatprep.subr.mxu0 0.0
        %389 = vmatpush2.msra.mxu0 0.0
        %390 = vmatprep.subr.mxu0 0.0
        %391 = vmatpush2.msra.mxu0 0.0
        %392 = vmatprep.subr.mxu0 0.0
        %393 = vmatpush2.msra.mxu0 0.0
        %394 = vmatprep.subr.mxu0 0.0
        %395 = vmatpush2.msra.mxu0 0.0
        %396 = vmatprep.subr.mxu0 0.0
        %397 = vmatpush2.msra.mxu0 0.0
        %398 = vmatprep.subr.mxu0 0.0
        %399 = vmatpush2.msra.mxu0 0.0
        %400 = vmatprep.subr.mxu0 0.0
        %401 = vmatpush2.msra.mxu0 0.0
        %402 = vmatprep.subr.mxu0 0.0
        %403 = vmatpush2.msra.mxu0 0.0
        %404 = vmatprep.subr.mxu0 0.0
        %405 = vmatpush2.msra.mxu0 0.0
        %406 = vmatprep.mubr.f32.mxu0 0.0
        %407 = vmatmul.mubr.f32.gmra.mxu0 %v340
        %v408 = vpop.f32.mrf.mxu0
        %v409 = vadd.f32 %v336, %v408
        %v410 = vpop.f32.mrf.mxu0
        %411 = vdwg.mxu0
        %412 = vst [vmem:[%s241] sm:$0xff] %v409
        %s413 = sand.u32 %s119, 1
        %s414 = scalar_lea.sflag [#allocation4], %s413
        %s415 = sand.u32 %s119, 1
        %s416 = smul.addr %s415, 8
        %s417 = scalar_lea.vmem [#allocation8], %s416
        // Predicated region
        $region49: #{tpu_custom_call.1} parent=35 // pred_check
          %p418 = pneg %p129
        $region50: #{tpu_custom_call.1} parent=35 // pred_check_branch
          %420 = sbr.rel (%p418) target = $region52
        $region51: #{tpu_custom_call.1} parent=35 // pred_region
          %s422 = ssub.s32 128, 128
          %423 = vsyncadd %s414, %s422
          %s424 = smul.addr %s22, 128
          %s425 = scalar_lea.hbm %s4, %s424
          %s427 = sshll.u32 %s417, 4
          %s428 = int_to_ptr.vmem [resolvable:$true] %s427
          %430 = dma.vmem_to_hbm [thread:$0]  %s428, 128, %s425, %s414
        $region52: #{tpu_custom_call.1} parent=35 // pred_fallthru
          _
      $region36: #{tpu_custom_call.1} parent=5 // pred_fallthru
        _
      %p431 = scmp.le.s32.totalorder 2, %s17
      // Predicated region
      $region53: #{tpu_custom_call.1} parent=5 // pred_check
        %p432 = pneg %p431
      $region54: #{tpu_custom_call.1} parent=5 // pred_check_branch
        %434 = sbr.rel (%p432) target = $region56
      $region55: #{tpu_custom_call.1} parent=5 // pred_region
        %s435 = ssub.s32 %s17, 2
        // Predicated region
        $region57: #{tpu_custom_call.1} parent=55 // pred_check
          %p436 = pneg %p135
        $region58: #{tpu_custom_call.1} parent=55 // pred_check_branch
          %438 = sbr.rel (%p436) target = $region60
        $region59: #{tpu_custom_call.1} parent=55 // pred_region
          %s439 = sand.u32 %s120, 1
          %s440 = scalar_lea.sflag [#allocation4], %s439
          %s441 = sand.u32 %s120, 1
          %s442 = smul.addr %s441, 8
          %s443 = scalar_lea.vmem [#allocation8], %s442
          %444 = dma.done %s440, 128
        $region60: #{tpu_custom_call.1} parent=55 // pred_fallthru
          _
      $region56: #{tpu_custom_call.1} parent=5 // pred_fallthru
        _
    $region6: #{tpu_custom_call.1} parent=1 // loop_footer
      %s21 = sadd.s32 1, %s17
    $region7: #{tpu_custom_call.1} parent=1 // loop_footer_branch
      %16 = sbr.rel target = $region3
    $region8: #{tpu_custom_call.1} parent=1 // loop_exit
      _
    %445 = vsyncpa [#allocation3], 1
    %s446 = scalar_lea.sflag [#allocation3], 1
    %447 = vsyncpa %s446, 1
    %448 = vsyncpa [#allocation6], 1
    %449 = vsyncpa [#allocation4], 1
    %s450 = scalar_lea.sflag [#allocation4], 1
    %451 = vsyncpa %s450, 1

</llo_original>
